<compile_context>
chip_gen: v5e
topology: v5e:2x2
jax: 0.10.0
libtpu: 0.0.40
codegen_flags: <defaults>
</compile_context>

<pallas_src>
import functools
import math

import numpy as np
import jax
import jax.numpy as jnp
from jax.experimental import pallas as pl
from jax.experimental.pallas import tpu as pltpu


def _round_up(x, m):
    return (x + m - 1) // m * m


def _sublane_tile(dtype):
    return {4: 8, 2: 16, 1: 32}[jnp.dtype(dtype).itemsize]


def _pick_batch_block(n, max_block):
    """Largest divisor of n that is <= max_block (no batch remainder masking)."""
    b = max(1, min(n, max_block))
    while n % b:
        b -= 1
    return b


def _interp_matrix_np(in_size, out_size):
    """(out_size, in_size) 1-D linear resize matrix, align_corners=True (PyTorch)."""
    if out_size == 1:
        src = np.zeros((1,), np.float64)
    else:
        src = np.arange(out_size, dtype=np.float64) * ((in_size - 1) / (out_size - 1))
    i0 = np.clip(np.floor(src).astype(np.int64), 0, in_size - 1)
    i1 = np.minimum(i0 + 1, in_size - 1)
    frac = (src - i0).astype(np.float32)
    m = np.zeros((out_size, in_size), np.float32)
    m[np.arange(out_size), i0] += (1.0 - frac)
    m[np.arange(out_size), i1] += frac
    return m


@functools.lru_cache(maxsize=None)
def _upsample_operator(h, w, hout, wout, hwp, dtype_name):
    """(h*w, hwp) operator: x_flat @ U == bilinear upsample, flattened to hout*wout
    and zero-padded to hwp lanes (multiple of 128).  Built with numpy, cached."""
    ah = _interp_matrix_np(h, hout)                               # (hout, h)
    aw = _interp_matrix_np(w, wout)                               # (wout, w)
    up_op = np.einsum('ph,qw->pqhw', ah, aw).reshape(hout * wout, h * w)
    u = np.zeros((h * w, hwp), np.float32)
    u[:, :hout * wout] = up_op.T
    return jnp.asarray(u).astype(jnp.dtype(dtype_name))


@functools.lru_cache(maxsize=None)
def _tap_masks(hout, wout, hwp, dtype_name):
    """(9, hwp) 0/1 masks: tap k=(dy+1)*3+(dx+1) is valid at flat position p*wout+q
    iff (p+dy, q+dx) is inside the image; lane-pad positions are 0."""
    p = np.arange(hout)[:, None]
    q = np.arange(wout)[None, :]
    masks = np.zeros((9, hwp), np.float32)
    k = 0
    for dy in (-1, 0, 1):
        for dx in (-1, 0, 1):
            valid = ((p + dy >= 0) & (p + dy < hout)
                     & (q + dx >= 0) & (q + dx < wout))
            masks[k, :hout * wout] = valid.reshape(-1)
            k += 1
    return jnp.asarray(masks).astype(jnp.dtype(dtype_name))


@functools.lru_cache(maxsize=None)
def _roll_matches_numpy():
    """One-time trace-time probe pinning pltpu.roll's shift convention to jnp.roll."""
    def _k(x_ref, o_ref):
        o_ref[...] = pltpu.roll(x_ref[...], 1, axis=1)
    x = jnp.tile(jax.lax.iota(jnp.float32, 128)[None, :], (8, 1))
    y = pl.pallas_call(_k, out_shape=jax.ShapeDtypeStruct((8, 128), jnp.float32))(x)
    return bool(jnp.all(y == jnp.roll(x, 1, axis=1)))


def _default_vmem_limit():
    try:
        cap = pltpu.get_tpu_info().vmem_capacity_bytes
    except Exception:
        cap = 64 * 1024 * 1024
    return int(min(cap * 3 // 4, 96 * 1024 * 1024))


def _make_kernel(cin, cin_p, bblk, vnir_cfg, swir_cfg, roll_sign):
    """cfg = (cout, hout, wout, hw_out, hwp); all compile-time constants."""
    taps = [(dy, dx) for dy in (-1, 0, 1) for dx in (-1, 0, 1)]

    def _branch(xm, u_ref, m_ref, w_ref, o_ref, col_ref, cfg):
        cout, hout, wout, hw_out, hwp = cfg
        # Stage 1: bilinear upsample of all bblk*cin channel-images, ONE MXU matmul
        # (batch stacked in the M dim).  U's pad lanes are zero -> `up` pad lanes
        # are exactly zero.
        up = jnp.dot(xm, u_ref[...], preferred_element_type=jnp.float32
                     ).astype(col_ref.dtype)                        # (bblk*cin, hwp)
        pad_rows = cin_p - cin
        zpad = jnp.zeros((pad_rows, hwp), col_ref.dtype) if pad_rows else None

        # Stage 2: im2col of the 3x3 / pad=1 conv: 8 lane rotations (XLU) + border
        # masks (VPU); batch moves from sublanes to lane-slabs of the col scratch so
        # the conv is ONE wide matmul.  Every row/lane of col is rewritten each grid
        # step (no stale data, no init pass, megacore-safe).
        for k, (dy, dx) in enumerate(taps):
            if dy == 0 and dx == 0:
                shifted = up                        # pad lanes already exactly zero
            else:
                delta = dy * wout + dx              # want shifted[i] == up[i + delta]
                shifted = pltpu.roll(up, (roll_sign * delta) % hwp, axis=1)
                shifted = shifted * m_ref[k:k + 1, :]
            for b in range(bblk):
                slab = shifted[b * cin:(b + 1) * cin, :]
                if pad_rows:
                    slab = jnp.concatenate([slab, zpad], axis=0)     # aligned slab
                col_ref[k * cin_p:(k + 1) * cin_p, b * hwp:(b + 1) * hwp] = slab

        # Stage 3: 3x3 conv == ONE MXU matmul over the whole (all-batch) im2col.
        y = jnp.dot(w_ref[...], col_ref[...],
                    preferred_element_type=jnp.float32)              # (cout, bblk*hwp)

        # Stage 4: InstanceNorm (biased var, eps=1e-5, no affine) + ReLU per image.
        # Pad lanes of y are exactly zero, so plain lane sums equal the valid-lane
        # sums and var = E[y^2] - mean^2 needs no masking.
        inv_n = jnp.float32(1.0 / hw_out)
        for b in range(bblk):
            yb = y[:, b * hwp:(b + 1) * hwp]
            mean = jnp.sum(yb, axis=1, keepdims=True) * inv_n
            var = jnp.maximum(jnp.sum(yb * yb, axis=1, keepdims=True) * inv_n
                              - mean * mean, 0.0)
            o_ref[b] = jnp.maximum(
                (yb - mean) * jax.lax.rsqrt(var + jnp.float32(1e-5)), 0.0
            ).astype(o_ref.dtype)

    def kernel(x_ref, uv_ref, mv_ref, wv_ref, us_ref, ms_ref, ws_ref,
               ov_ref, os_ref, col_v_ref, col_s_ref):
        xm = x_ref[0]                                                # (bblk*cin, h*w)
        _branch(xm, uv_ref, mv_ref, wv_ref, ov_ref, col_v_ref, vnir_cfg)
        _branch(xm, us_ref, ms_ref, ws_ref, os_ref, col_s_ref, swir_cfg)

    return kernel


def multiscale_upsampling_block(x, params, vnir_scale=3.0, swir_scale=1.5,
                                compute_dtype=jnp.bfloat16, batch_block=8):
    """Pallas-TPU MultiscaleUpsamplingBlock.forward.  Returns (vnir, swir) float32.

    compute_dtype=bf16 keeps MXU operands bf16 (f32 accumulation).  The conv biases
    in `params` are ignored: they are exactly cancelled by the no-affine InstanceNorm.
    """
    n, cin, h, w = x.shape
    cdt = jnp.dtype(compute_dtype)
    sub = _sublane_tile(cdt)
    cin_p = _round_up(cin, sub)        # sublane-aligned per-tap group in the im2col
    rows_p = 9 * cin_p
    bblk = _pick_batch_block(n, batch_block)
    grid = n // bblk
    roll_sign = -1 if _roll_matches_numpy() else 1

    def _setup(weight, scale):
        cout = weight.shape[0]
        hout, wout = int(math.floor(h * scale)), int(math.floor(w * scale))
        hw_out = hout * wout
        hwp = _round_up(hw_out, 128)   # lane-dense: unmasked stores / dense reductions
        u = _upsample_operator(h, w, hout, wout, hwp, cdt.name)
        m = _tap_masks(hout, wout, hwp, cdt.name)
        w2 = jnp.transpose(weight.astype(cdt), (0, 2, 3, 1)).reshape(cout, 9, cin)
        w2 = jnp.pad(w2, ((0, 0), (0, 0), (0, cin_p - cin))).reshape(cout, rows_p)
        return (cout, hout, wout, hw_out, hwp), u, m, w2

    vnir_cfg, u_v, m_v, w2_v = _setup(params["vnir_w"], vnir_scale)
    swir_cfg, u_s, m_s, w2_s = _setup(params["swir_w"], swir_scale)
    cout_v, hout_v, wout_v, hw_v, hwp_v = vnir_cfg
    cout_s, hout_s, wout_s, hw_s, hwp_s = swir_cfg

    # Batch-blocked, spatially flattened input (wrapper-side layout plumbing).
    xg = x.astype(cdt).reshape(grid, bblk * cin, h * w)

    kernel = _make_kernel(cin, cin_p, bblk, vnir_cfg, swir_cfg, roll_sign)
    out_v, out_s = pl.pallas_call(
        kernel,
        out_shape=(jax.ShapeDtypeStruct((n, cout_v, hwp_v), jnp.float32),
                   jax.ShapeDtypeStruct((n, cout_s, hwp_s), jnp.float32)),
        grid=(grid,),
        in_specs=[
            pl.BlockSpec((1, bblk * cin, h * w), lambda i: (i, 0, 0)),  # x block
            pl.BlockSpec((h * w, hwp_v), lambda i: (0, 0)),             # VNIR upsample op
            pl.BlockSpec((9, hwp_v), lambda i: (0, 0)),                 # VNIR tap masks
            pl.BlockSpec((cout_v, rows_p), lambda i: (0, 0)),           # VNIR conv weights
            pl.BlockSpec((h * w, hwp_s), lambda i: (0, 0)),             # SWIR upsample op
            pl.BlockSpec((9, hwp_s), lambda i: (0, 0)),                 # SWIR tap masks
            pl.BlockSpec((cout_s, rows_p), lambda i: (0, 0)),           # SWIR conv weights
        ],
        out_specs=(
            pl.BlockSpec((bblk, cout_v, hwp_v), lambda i: (i, 0, 0)),
            pl.BlockSpec((bblk, cout_s, hwp_s), lambda i: (i, 0, 0)),
        ),
        scratch_shapes=[pltpu.VMEM((rows_p, bblk * hwp_v), cdt),        # VNIR im2col
                        pltpu.VMEM((rows_p, bblk * hwp_s), cdt)],       # SWIR im2col
        compiler_params=pltpu.CompilerParams(
            dimension_semantics=("parallel",),
            vmem_limit_bytes=_default_vmem_limit()),
    )(xg, u_v, m_v, w2_v, u_s, m_s, w2_s)

    vnir = out_v[:, :, :hw_v].reshape(n, cout_v, hout_v, wout_v)
    swir = out_s[:, :, :hw_s].reshape(n, cout_s, hout_s, wout_s)
    return vnir, swir


# ------------------------- pure-JAX reference (for checking) -------------------------
def _reference_branch(x, weight, bias, scale_factor, eps=1e-5):
    n, cin, h, w = x.shape
    hout = int(math.floor(h * scale_factor))
    wout = int(math.floor(w * scale_factor))
    ah = jnp.asarray(_interp_matrix_np(h, hout))
    aw = jnp.asarray(_interp_matrix_np(w, wout))
    up = jnp.einsum('ph,nchw,qw->ncpq', ah, x.astype(jnp.float32), aw)
    y = jax.lax.conv_general_dilated(
        up, weight.astype(jnp.float32), window_strides=(1, 1), padding='SAME',
        dimension_numbers=('NCHW', 'OIHW', 'NCHW'))
    y = y + bias.astype(jnp.float32)[None, :, None, None]
    mean = y.mean(axis=(2, 3), keepdims=True)
    var = ((y - mean) ** 2).mean(axis=(2, 3), keepdims=True)
    return jnp.maximum((y - mean) / jnp.sqrt(var + eps), 0.0)


if __name__ == "__main__":
    batch, in_channels, H, W = 2, 4, 8, 8
    vnir_channels, swir_channels = 4, 2
    vnir_scale, swir_scale = 3.0, 1.5

    key = jax.random.PRNGKey(0)
    kx, kw1, kb1, kw2, kb2 = jax.random.split(key, 5)
    x = jax.random.normal(kx, (batch, in_channels, H, W), dtype=jnp.float32)
    params = {
        "vnir_w": 0.1 * jax.random.normal(kw1, (vnir_channels, in_channels, 3, 3), jnp.float32),
        "vnir_b": 0.1 * jax.random.normal(kb1, (vnir_channels,), jnp.float32),
        "swir_w": 0.1 * jax.random.normal(kw2, (swir_channels, in_channels, 3, 3), jnp.float32),
        "swir_b": 0.1 * jax.random.normal(kb2, (swir_channels,), jnp.float32),
    }

    vnir_ref = _reference_branch(x, params["vnir_w"], params["vnir_b"], vnir_scale)
    swir_ref = _reference_branch(x, params["swir_w"], params["swir_b"], swir_scale)

    # f32 MXU operands: tight check.
    vnir_f32, swir_f32 = multiscale_upsampling_block(
        x, params, vnir_scale, swir_scale, compute_dtype=jnp.float32)
    jax.block_until_ready((vnir_f32, swir_f32))
    assert vnir_f32.shape == (batch, vnir_channels, int(H * vnir_scale), int(W * vnir_scale))
    assert swir_f32.shape == (batch, swir_channels, int(H * swir_scale), int(W * swir_scale))
    np.testing.assert_allclose(np.asarray(vnir_f32), np.asarray(vnir_ref), rtol=1e-2, atol=1e-2)
    np.testing.assert_allclose(np.asarray(swir_f32), np.asarray(swir_ref), rtol=1e-2, atol=1e-2)

    # bf16 MXU operands (default; recommended on v6e/v7x): looser check.
    vnir_bf, swir_bf = multiscale_upsampling_block(x, params, vnir_scale, swir_scale)
    jax.block_until_ready((vnir_bf, swir_bf))
    np.testing.assert_allclose(np.asarray(vnir_bf), np.asarray(vnir_ref), rtol=5e-2, atol=5e-2)
    np.testing.assert_allclose(np.asarray(swir_bf), np.asarray(swir_ref), rtol=5e-2, atol=5e-2)

    print("KERNEL_OK")
</pallas_src>

<mosaic_0001>
module attributes {stable_mosaic.version = 11 : i64} {
  func.func @_k(%arg0: memref<8x128xf32, #tpu.memory_space<vmem>>, %arg1: memref<8x128xf32, #tpu.memory_space<vmem>>) attributes {dimension_semantics = [], scalar_prefetch = 0 : i64, scratch_operands = 0 : i64, tpu.core_type = #tpu.core_type<tc>} {
    %c0 = arith.constant 0 : index
    %c0_0 = arith.constant 0 : index
    %0 = vector.load %arg0[%c0, %c0_0] : memref<8x128xf32, #tpu.memory_space<vmem>>, vector<8x128xf32>
    %c1_i32 = arith.constant 1 : i32
    %1 = tpu.dynamic_rotate %0 by %c1_i32 dim 1 : vector<8x128xf32>, i32 -> vector<8x128xf32>
    %c0_1 = arith.constant 0 : index
    %c0_2 = arith.constant 0 : index
    %2 = vector.load %arg1[%c0_1, %c0_2] : memref<8x128xf32, #tpu.memory_space<vmem>>, vector<8x128xf32>
    tpu.vector_store %arg1[%c0_1, %c0_2], %1 {strides = array<i32>} : memref<8x128xf32, #tpu.memory_space<vmem>>, vector<8x128xf32>,
    return
  }
}

</mosaic_0001>

<llo_original>
// kernel: tpu_custom_call.1
$region0: #{tpu_custom_call.1}
  #allocation0 [shape = 'u32[]', space=smem, size = 0x4, offset = 0x4, fixed_abs, tag = 'smem constant byte address 0x4 - core index']
  #allocation1 [shape = 'u32[72,128]{1,0:T(1,128)}', space=vmem, size = 0x9000, scoped, tag = 'internal scratch']
  %s0 = inlined_call_operand.hbm [shape: f32[8,128], index: 0, kind: input, shape index: {}]
  %s1 = inlined_call_operand.hbm [shape: f32[8,128], index: 1, kind: output, shape index: {}]
  %s2 = sld [smem:[#allocation0]]
  $region18: #{tpu_custom_call.1} parent=0
    _
  %s4 = ssub.s32 1, %s2
  %s5 = scalar_select 0, %s4, %s2
  $region1: #{tpu_custom_call.1} parent=0
    #allocation2 [shape = 'u8[4096]{0}', space=vmem, size = 0x1000, scoped, tag = 'input window, operand 0, single buffered']
    #allocation3 [shape = 's32[1]{0}', space=sflag, size = 0x4, scoped, tag = 'scoped memory for tpu_custom_call.1']
    #allocation4 [shape = 's32[1]{0}', space=sflag, size = 0x4, scoped, tag = 'scoped memory for tpu_custom_call.1']
    #allocation5 [shape = 'u8[4096]{0}', space=vmem, size = 0x1000, scoped, tag = 'output window, operand 0, single buffered']
    %6 = vsyncpa [#allocation3], 0
    %7 = vsyncpa [#allocation4], 0
    // Predicated region
    $region2: #{tpu_custom_call.1} parent=1 // pred_check
      _
    $region3: #{tpu_custom_call.1} parent=1 // pred_check_branch
      %9 = sbr.rel (0) target = $region5
    $region4: #{tpu_custom_call.1} parent=1 // pred_region
      %11 = vsyncadd [#allocation3], 0
      %s13 = sshll.u32 %s0, 4
      %s14 = int_to_ptr.hbm [resolvable:$true] %s13
      %s15 = sshll.u32 [#allocation2], 4
      %s16 = int_to_ptr.vmem [resolvable:$true] %s15
      %18 = dma.hbm_to_vmem [thread:$0]  %s14, 128, %s16, [#allocation3]
    $region5: #{tpu_custom_call.1} parent=1 // pred_fallthru
      _
    // Predicated region
    $region6: #{tpu_custom_call.1} parent=1 // pred_check
      _
    $region7: #{tpu_custom_call.1} parent=1 // pred_check_branch
      %20 = sbr.rel (0) target = $region9
    $region8: #{tpu_custom_call.1} parent=1 // pred_region
      %22 = dma.done [#allocation3], 128
    $region9: #{tpu_custom_call.1} parent=1 // pred_fallthru
      _
    %v23 = vld [vmem:[#allocation2] sm:$0xff]
    %24 = vrot.lane.b32.xlu0 %v23, 1
    %v25 = vpop.permute.xlu0 %24
    %26 = vst [vmem:[#allocation5] sm:$0xff] %v25
    // Predicated region
    $region10: #{tpu_custom_call.1} parent=1 // pred_check
      _
    $region11: #{tpu_custom_call.1} parent=1 // pred_check_branch
      %28 = sbr.rel (0) target = $region13
    $region12: #{tpu_custom_call.1} parent=1 // pred_region
      %30 = vsyncadd [#allocation4], 0
      %s32 = sshll.u32 [#allocation5], 4
      %s33 = int_to_ptr.vmem [resolvable:$true] %s32
      %s34 = sshll.u32 %s1, 4
      %s35 = int_to_ptr.hbm [resolvable:$true] %s34
      %37 = dma.vmem_to_hbm [thread:$0]  %s33, 128, %s35, [#allocation4]
    $region13: #{tpu_custom_call.1} parent=1 // pred_fallthru
      _
    // Predicated region
    $region14: #{tpu_custom_call.1} parent=1 // pred_check
      _
    $region15: #{tpu_custom_call.1} parent=1 // pred_check_branch
      %39 = sbr.rel (0) target = $region17
    $region16: #{tpu_custom_call.1} parent=1 // pred_region
      %41 = dma.done [#allocation4], 128
    $region17: #{tpu_custom_call.1} parent=1 // pred_fallthru
      _
    %42 = vsyncpa [#allocation3], 1
    %43 = vsyncpa [#allocation4], 1

</llo_original>
